<compile_context>
chip_gen: v6e
topology: v6e:2x2x1
jax: 0.10.0
libtpu: 0.0.40
codegen_flags: <defaults>
</compile_context>

<pallas_src>
import jax
import jax.numpy as jnp
from jax.experimental import pallas as pl
from jax.experimental.pallas import tpu as pltpu

_SMALL_OUTPUT_BYPASS_BYTES = 2 << 20  # below this, jnp.broadcast_to wins outright


def _expand_kernel(ctx_ref, out_ref):
    # ctx_ref : (1, TF)  lane-dense prompt chunk
    # out_ref : (TB, TF) batch tile — replicate the single row across TB rows.
    out_ref[...] = jnp.broadcast_to(ctx_ref[...], out_ref.shape)


def _sublane_pack(dtype) -> int:
    # Native sublane packing: 8 rows for 4-byte, 16 for 2-byte, 32 for 1-byte.
    itemsize = max(1, jnp.dtype(dtype).itemsize)
    return max(8, 32 // itemsize)


def _tpu_vmem_capacity_bytes() -> int:
    try:
        info = pltpu.get_tpu_info()
        cap = getattr(info, "vmem_capacity_bytes", None)
        if cap:
            return int(cap)
    except Exception:
        pass
    return 64 << 20  # conservative default: v7x per-TensorCore VMEM


def _choose_tiles(batch: int, flat: int, itemsize: int, pack: int,
                  target_tile_bytes: int):
    """Pick (tb, tf): batch tile (multiple of pack or full batch) and flat tile
    (multiple of 128 or full flat) sized near `target_tile_bytes`."""
    # ---- flat-dim tile (second grid axis, only when lane-aligned) ----
    tf = flat
    if flat % 128 == 0:
        # Keep even the smallest legal batch tile (pack rows) within budget.
        max_row_tile_bytes = max(target_tile_bytes // pack, 128 * itemsize)
        # Halve while it keeps a 128-multiple; soft budget if flat has an odd factor.
        while tf * itemsize > max_row_tile_bytes and tf % 256 == 0:
            tf //= 2

    tile_row_bytes = tf * itemsize

    # ---- batch-dim tile ----
    cap = max(1, target_tile_bytes // max(tile_row_bytes, 1))
    if batch <= cap:
        tb = batch  # whole batch in one tile along the batch axis
        # Balanced 2-way split so v7x's two TensorCores each write half.
        if tf == flat and batch % (2 * pack) == 0 and batch >= 2 * pack:
            tb = batch // 2
        return tb, tf
    tb = min(batch, max(pack, (cap // pack) * pack))
    return tb, tf


def vpt_deep_prompt_forward(ctx: jax.Array, batch_size: int,
                            *, force_pallas: bool = False) -> jax.Array:
    """ctx: (bottom_limit, n_ctx, ctx_dim) -> (batch_size, bottom_limit, n_ctx, ctx_dim)."""
    bottom_limit, n_ctx, ctx_dim = ctx.shape
    flat = bottom_limit * n_ctx * ctx_dim
    itemsize = jnp.dtype(ctx.dtype).itemsize
    row_bytes = flat * itemsize
    out_shape4 = (batch_size, bottom_limit, n_ctx, ctx_dim)

    # Small-output bypass: launch + per-step overhead dominates; let XLA fuse.
    if not force_pallas and batch_size * row_bytes < _SMALL_OUTPUT_BYPASS_BYTES:
        return jnp.broadcast_to(ctx[None], out_shape4)

    vmem_cap = _tpu_vmem_capacity_bytes()
    target_tile_bytes = (24 << 20) if vmem_cap >= (96 << 20) else (16 << 20)

    pack = _sublane_pack(ctx.dtype)
    tb, tf = _choose_tiles(batch_size, flat, itemsize, pack, target_tile_bytes)
    grid = (pl.cdiv(batch_size, tb), pl.cdiv(flat, tf))

    # Explicit scoped-VMEM budget: double-buffered output tile + double-
    # buffered ctx chunk + headroom, clamped under the physical capacity.
    vmem_bytes = 2 * tb * tf * itemsize + 2 * tf * itemsize + (2 << 20)
    vmem_limit = int(min(max(vmem_bytes, 16 << 20),
                         max(vmem_cap - (4 << 20), 16 << 20)))

    ctx_flat = ctx.reshape(1, flat)  # lane-dense prompt slab

    out_flat = pl.pallas_call(
        _expand_kernel,
        out_shape=jax.ShapeDtypeStruct((batch_size, flat), ctx.dtype),
        grid_spec=pltpu.PrefetchScalarGridSpec(
            num_scalar_prefetch=0,
            grid=grid,
            in_specs=[
                # Batch-invariant block index: ctx chunk is re-used across the
                # batch axis; it only rotates along the (usually size-1) flat axis.
                pl.BlockSpec((1, tf), lambda b, f: (0, f)),
            ],
            out_specs=pl.BlockSpec((tb, tf), lambda b, f: (b, f)),
        ),
        compiler_params=pltpu.CompilerParams(
            dimension_semantics=("parallel", "parallel"),
            vmem_limit_bytes=vmem_limit,
        ),
        cost_estimate=pl.CostEstimate(
            flops=0,
            transcendentals=0,
            bytes_accessed=row_bytes + batch_size * row_bytes,
        ),
    )(ctx_flat)

    return out_flat.reshape(out_shape4)


class VPTDeepPromptLearnerJAX:
    """Deterministic, in-script re-creation of VPTDeepPromptLearner's parameters."""

    def __init__(self, *, n_ctx_vision: int, ctx_dim: int, layers: int,
                 bottom_limit_cfg: int, key: jax.Array, dtype=jnp.float32):
        self.n_ctx = n_ctx_vision
        self.ctx_dim = ctx_dim
        self.layers = layers
        self.bottom_limit = bottom_limit_cfg - 1
        self.meta_net_num = self.layers - self.bottom_limit
        self.dtype = dtype
        # nn.init.normal_(ctx_vectors, std=0.02)
        self.ctx = (
            0.02 * jax.random.normal(key, (self.bottom_limit, self.n_ctx, self.ctx_dim))
        ).astype(dtype)

    def __call__(self, batch_size: int, *, force_pallas: bool = False) -> jax.Array:
        return vpt_deep_prompt_forward(self.ctx, batch_size, force_pallas=force_pallas)


if __name__ == "__main__":
    key = jax.random.PRNGKey(0)

    # 1) Module-consistent small shapes: n_ctx=8, ctx_dim=32, bottom_limit=5-1=4.
    learner = VPTDeepPromptLearnerJAX(
        n_ctx_vision=8, ctx_dim=32, layers=12, bottom_limit_cfg=5,
        key=key, dtype=jnp.float32,
    )
    batch_size = 2
    ref = jnp.broadcast_to(learner.ctx[None], (batch_size,) + learner.ctx.shape)

    # Auto path (tiny output -> XLA broadcast bypass).
    out_auto = jax.block_until_ready(learner(batch_size))
    assert out_auto.shape == ref.shape and out_auto.dtype == learner.ctx.dtype
    assert jnp.array_equal(out_auto, ref)

    # Forced Pallas path (exercises the kernel on the module's own shapes).
    out_pl = jax.block_until_ready(learner(batch_size, force_pallas=True))
    assert out_pl.shape == ref.shape and out_pl.dtype == learner.ctx.dtype
    assert jnp.array_equal(out_pl, ref)

    # 2) Partial-last-batch-tile / lane-aligned flat: ctx (4,8,128), batch=10.
    ctx2 = (0.02 * jax.random.normal(jax.random.PRNGKey(0), (4, 8, 128))).astype(jnp.float32)
    out2 = jax.block_until_ready(vpt_deep_prompt_forward(ctx2, 10, force_pallas=True))
    ref2 = jnp.broadcast_to(ctx2[None], (10,) + ctx2.shape)
    assert out2.shape == ref2.shape and jnp.array_equal(out2, ref2)

    # 3) Above the bypass threshold (auto Pallas path) with a balanced 2-way
    #    batch split: f32, flat=4096, batch=192 -> two equal (96, 4096) tiles.
    out3 = jax.block_until_ready(vpt_deep_prompt_forward(ctx2, 192))
    ref3 = jnp.broadcast_to(ctx2[None], (192,) + ctx2.shape)
    assert out3.shape == ref3.shape and jnp.array_equal(out3, ref3)

    # 4) Dtype-aware sublane pack (bf16 -> 16-row pack): batch=64 -> two (32, 4096) tiles.
    ctx4 = ctx2.astype(jnp.bfloat16)
    out4 = jax.block_until_ready(vpt_deep_prompt_forward(ctx4, 64, force_pallas=True))
    ref4 = jnp.broadcast_to(ctx4[None], (64,) + ctx4.shape)
    assert out4.shape == ref4.shape and out4.dtype == jnp.bfloat16
    assert jnp.array_equal(out4, ref4)

    print("KERNEL_OK")
</pallas_src>

<mosaic_0001>
module attributes {stable_mosaic.version = 11 : i64} {
  func.func @_expand_kernel(%arg0: i32, %arg1: i32, %arg2: memref<1x1024xf32, #tpu.memory_space<vmem>>, %arg3: memref<2x1024xf32, #tpu.memory_space<vmem>>) attributes {dimension_semantics = [#tpu.dimension_semantics<parallel>, #tpu.dimension_semantics<parallel>], iteration_bounds = array<i64: 1, 1>, scalar_prefetch = 0 : i64, scratch_operands = 0 : i64, tpu.core_type = #tpu.core_type<tc>, window_params = [{transform_indices = @transform_0, window_bounds = array<i64: 1, 1024>}, {transform_indices = @transform_1, window_bounds = array<i64: 2, 1024>}]} {
    %c0 = arith.constant 0 : index
    %c0_0 = arith.constant 0 : index
    %0 = vector.load %arg2[%c0, %c0_0] : memref<1x1024xf32, #tpu.memory_space<vmem>>, vector<1x1024xf32>
    %1 = vector.shape_cast %0 : vector<1x1024xf32> to vector<1x1024xf32>
    %2 = vector.broadcast %1 : vector<1x1024xf32> to vector<2x1024xf32>
    %c0_1 = arith.constant 0 : index
    %c0_2 = arith.constant 0 : index
    %3 = vector.load %arg3[%c0_1, %c0_2] : memref<2x1024xf32, #tpu.memory_space<vmem>>, vector<2x1024xf32>
    tpu.vector_store %arg3[%c0_1, %c0_2], %2 {strides = array<i32>} : memref<2x1024xf32, #tpu.memory_space<vmem>>, vector<2x1024xf32>,
    return
  }
  func.func @transform_0(%arg0: i32, %arg1: i32) -> (i32, i32) {
    %c0_i32 = arith.constant 0 : i32
    %c0_i32_0 = arith.constant 0 : i32
    return %c0_i32, %arg1 : i32, i32
  }
  func.func @transform_1(%arg0: i32, %arg1: i32) -> (i32, i32) {
    %c0_i32 = arith.constant 0 : i32
    return %arg0, %arg1 : i32, i32
  }
}

</mosaic_0001>

<llo_original>
// kernel: tpu_custom_call.1
$region0: #{tpu_custom_call.1}
  #allocation0 [shape = 'u32[]', space=smem, size = 0x4, offset = 0x4, fixed_abs, tag = 'smem constant byte address 0x4 - core index']
  #allocation1 [shape = 'u32[144,128]{1,0:T(1,128)}', space=vmem, size = 0x12000, scoped, tag = 'internal scratch']
  %s0 = inlined_call_operand.hbm [shape: f32[1,1024], index: 0, kind: input, shape index: {}]
  %s1 = inlined_call_operand.hbm [shape: f32[2,1024], index: 1, kind: output, shape index: {}]
  %s2 = sld [smem:[#allocation0]]
  $region18: #{tpu_custom_call.1} parent=0
    _
  %s4 = ssub.s32 1, %s2
  %s5 = scalar_select 0, %s4, %s2
  $region1: #{tpu_custom_call.1} parent=0
    #allocation2 [shape = 'u8[4096]{0}', space=vmem, size = 0x1000, scoped, tag = 'input window, operand 0, single buffered']
    #allocation3 [shape = 's32[1]{0}', space=sflag, size = 0x4, scoped, tag = 'scoped memory for tpu_custom_call.1']
    #allocation4 [shape = 's32[1]{0}', space=sflag, size = 0x4, scoped, tag = 'scoped memory for tpu_custom_call.1']
    #allocation5 [shape = 'u8[8192]{0}', space=vmem, size = 0x2000, scoped, tag = 'output window, operand 0, single buffered']
    %6 = vsyncpa [#allocation3], 0
    %7 = vsyncpa [#allocation4], 0
    // Predicated region
    $region2: #{tpu_custom_call.1} parent=1 // pred_check
      _
    $region3: #{tpu_custom_call.1} parent=1 // pred_check_branch
      %9 = sbr.rel (0) target = $region5
    $region4: #{tpu_custom_call.1} parent=1 // pred_region
      %s11 = ssub.s32 128, 128
      %12 = vsyncadd [#allocation3], %s11
      %s14 = sshll.u32 [#allocation2], 4
      %s15 = int_to_ptr.vmem [resolvable:$true] %s14
      %17 = dma.hbm_to_vmem [thread:$0]  %s0, 128, %s15, [#allocation3]
    $region5: #{tpu_custom_call.1} parent=1 // pred_fallthru
      _
    // Predicated region
    $region6: #{tpu_custom_call.1} parent=1 // pred_check
      _
    $region7: #{tpu_custom_call.1} parent=1 // pred_check_branch
      %19 = sbr.rel (0) target = $region9
    $region8: #{tpu_custom_call.1} parent=1 // pred_region
      %20 = dma.done [#allocation3], 128
    $region9: #{tpu_custom_call.1} parent=1 // pred_fallthru
      _
    %v21 = vld [vmem:[#allocation2] sm:$0xff]
    %v23 = vlaneseq
    %v24 = vshrl.u32 %v23, 7
    %v25 = vsub.s32 0, %v24
    %v26 = vrot.slane %v21, %v25
    %v27 = vlaneseq
    %v28 = vshrl.u32 %v27, 7
    %v29 = vsub.s32 1, %v28
    %v30 = vrot.slane %v21, %v29
    %v31 = vlaneseq
    %v32 = vshrl.u32 %v31, 7
    %v33 = vsub.s32 2, %v32
    %v34 = vrot.slane %v21, %v33
    %v35 = vlaneseq
    %v36 = vshrl.u32 %v35, 7
    %v37 = vsub.s32 3, %v36
    %v38 = vrot.slane %v21, %v37
    %v39 = vlaneseq
    %v40 = vshrl.u32 %v39, 7
    %v41 = vsub.s32 4, %v40
    %v42 = vrot.slane %v21, %v41
    %v43 = vlaneseq
    %v44 = vshrl.u32 %v43, 7
    %v45 = vsub.s32 5, %v44
    %v46 = vrot.slane %v21, %v45
    %v47 = vlaneseq
    %v48 = vshrl.u32 %v47, 7
    %v49 = vsub.s32 6, %v48
    %v50 = vrot.slane %v21, %v49
    %v51 = vlaneseq
    %v52 = vshrl.u32 %v51, 7
    %v53 = vsub.s32 7, %v52
    %v54 = vrot.slane %v21, %v53
    %v55 = vcombine.low %v26, %v30
    %v56 = vcombine.low %v34, %v38
    %v58 = vunpack.c.l.s4 1983009808
    %v59 = vunpack.c.0.s8 %v58
    %v60 = vlaneseq
    %v61 = vshrl.u32 %v60, 7
    %v62 = vsub.s32 %v59, %v61
    %v63 = vrot.slane %v55, %v62
    %v65 = vunpack.c.l.s4 1983009808
    %v66 = vunpack.c.0.s8 %v65
    %v67 = vlaneseq
    %v68 = vshrl.u32 %v67, 7
    %v69 = vsub.s32 %v66, %v68
    %v70 = vrot.slane %v56, %v69
    %v71 = vcombine.low %v63, %v70
    %v72 = vcombine.low %v42, %v46
    %v73 = vcombine.low %v50, %v54
    %v75 = vunpack.c.l.s4 1983009808
    %v76 = vunpack.c.0.s8 %v75
    %v77 = vlaneseq
    %v78 = vshrl.u32 %v77, 7
    %v79 = vsub.s32 %v76, %v78
    %v80 = vrot.slane %v72, %v79
    %v82 = vunpack.c.l.s4 1983009808
    %v83 = vunpack.c.0.s8 %v82
    %v84 = vlaneseq
    %v85 = vshrl.u32 %v84, 7
    %v86 = vsub.s32 %v83, %v85
    %v87 = vrot.slane %v73, %v86
    %v88 = vcombine.low %v80, %v87
    %91 = vst [vmem:[#allocation5] sm:$0xff] %v71
    %92 = vst [vmem:[#allocation5 + $0x8] sm:$0xff] %v88
    // Predicated region
    $region10: #{tpu_custom_call.1} parent=1 // pred_check
      _
    $region11: #{tpu_custom_call.1} parent=1 // pred_check_branch
      %94 = sbr.rel (0) target = $region13
    $region12: #{tpu_custom_call.1} parent=1 // pred_region
      %s96 = ssub.s32 256, 256
      %97 = vsyncadd [#allocation4], %s96
      %s99 = sshll.u32 [#allocation5], 4
      %s100 = int_to_ptr.vmem [resolvable:$true] %s99
      %102 = dma.vmem_to_hbm [thread:$0]  %s100, 256, %s1, [#allocation4]
    $region13: #{tpu_custom_call.1} parent=1 // pred_fallthru
      _
    // Predicated region
    $region14: #{tpu_custom_call.1} parent=1 // pred_check
      _
    $region15: #{tpu_custom_call.1} parent=1 // pred_check_branch
      %104 = sbr.rel (0) target = $region17
    $region16: #{tpu_custom_call.1} parent=1 // pred_region
      %105 = dma.done [#allocation4], 256
    $region17: #{tpu_custom_call.1} parent=1 // pred_fallthru
      _
    %106 = vsyncpa [#allocation3], 1
    %107 = vsyncpa [#allocation4], 1

</llo_original>
